<compile_context>
chip_gen: v6e
topology: v6e:2x2x1
jax: 0.10.0
libtpu: 0.0.40
codegen_flags: <defaults>
</compile_context>

<pallas_src>
import jax
import jax.numpy as jnp
from jax import lax
from jax.experimental import pallas as pl
from jax.experimental.pallas import tpu as pltpu


def rnn_fc_kernel(x_ref, wih_ref, whh_ref, b_ref, wfc_ref, bfc_ref,
                  out_ref, h_hist):
    # x_ref:   (T, Bp, I)   time-major input, Bp a multiple of 8
    # b_ref:   (1, H)       pre-folded b_ih + b_hh
    # out_ref: (T, Bp, O)   time-major output
    # h_hist:  (T*Bp, H)    VMEM scratch holding the hidden-state history
    T, Bp, I = x_ref.shape
    H = whh_ref.shape[1]
    O = wfc_ref.shape[1]

    # --- Input projection, hoisted out of the recurrence, one MXU matmul ---
    # pre[t*Bp + b, :] = x[t, b, :] @ W_ih + (b_ih + b_hh)
    pre = (jnp.dot(x_ref[...].reshape(T * Bp, I), wih_ref[...],
                   preferred_element_type=jnp.float32)
           + b_ref[...]).reshape(T, Bp, H)

    w_hh = whh_ref[...]                         # (H, H)

    # --- Serial recurrence, fully unrolled (T is small & static) -----------
    # Step 0: h_prev = 0, so no matmul needed.  Each step's hidden state is
    # stored to the scratch at a static offset (multiple of 8 sublanes).
    h = jnp.tanh(pre[0])                        # (Bp, H)
    h_hist[pl.ds(0, Bp), :] = h
    for t in range(1, T):
        h = jnp.tanh(pre[t] +
                     jnp.dot(h, w_hh, preferred_element_type=jnp.float32))
        h_hist[pl.ds(t * Bp, Bp), :] = h

    # --- FC projection, hoisted out of the loop: one matmul + one store ----
    y = (jnp.dot(h_hist[...], wfc_ref[...], preferred_element_type=jnp.float32)
         + bfc_ref[...])                        # (T*Bp, O)
    out_ref[...] = y.reshape(T, Bp, O).astype(out_ref.dtype)


@jax.jit
def rnn_forward(x, params):
    """x: (B, T, I) float32 -> (B, T, O) float32.  Fully fused under jit."""
    B, T, I = x.shape
    H = params["w_hh"].shape[0]
    O = params["w_fc"].shape[1]

    # Pad batch up to the 8-sublane granularity (padded rows cost nothing
    # inside the kernel; everything is VMEM-resident).
    Bp = ((B + 7) // 8) * 8
    if Bp != B:
        x = jnp.pad(x, ((0, Bp - B), (0, 0), (0, 0)))
    x_tm = jnp.transpose(x, (1, 0, 2))          # (T, Bp, I) time-major

    # Fold the two RNN biases once (fused under the same jit).
    b = params["b_ih"] + params["b_hh"]         # (1, H)

    # Single program, no grid: the recurrence is serial in T and the batch is
    # tiny, so cross-TC sharding / tiling would be pure overhead.
    vmem = pl.BlockSpec(memory_space=pltpu.MemorySpace.VMEM)
    y = pl.pallas_call(
        rnn_fc_kernel,
        out_shape=jax.ShapeDtypeStruct((T, Bp, O), jnp.float32),
        in_specs=[vmem] * 6,
        out_specs=vmem,
        scratch_shapes=[pltpu.VMEM((T * Bp, H), jnp.float32)],
    )(x_tm, params["w_ih"], params["w_hh"], b, params["w_fc"], params["b_fc"])

    out = jnp.transpose(y, (1, 0, 2))           # (Bp, T, O)
    return out[:B]


def init_params(key, input_size=2, hidden_size=64, out_size=2):
    # Deterministic init mirroring PyTorch's U(-1/sqrt(H), 1/sqrt(H)) ranges.
    ks = jax.random.split(key, 6)
    k_rnn = 1.0 / jnp.sqrt(hidden_size)
    k_fc = 1.0 / jnp.sqrt(hidden_size)
    u = lambda k, shape, a: jax.random.uniform(k, shape, jnp.float32, -a, a)
    return {
        # stored pre-transposed for the kernel: x @ w_ih == x @ W_ih^T
        "w_ih": u(ks[0], (input_size, hidden_size), k_rnn),
        "w_hh": u(ks[1], (hidden_size, hidden_size), k_rnn),
        "b_ih": u(ks[2], (1, hidden_size), k_rnn),
        "b_hh": u(ks[3], (1, hidden_size), k_rnn),
        "w_fc": u(ks[4], (hidden_size, out_size), k_fc),
        "b_fc": u(ks[5], (1, out_size), k_fc),
    }


def rnn_forward_ref(x, params):
    # Pure-JAX reference of the same math (for a sanity check).
    def step(h, x_t):
        h_new = jnp.tanh(x_t @ params["w_ih"] + params["b_ih"]
                         + h @ params["w_hh"] + params["b_hh"])
        y = h_new @ params["w_fc"] + params["b_fc"]
        return h_new, y
    B = x.shape[0]
    H = params["w_hh"].shape[0]
    h0 = jnp.zeros((B, H), jnp.float32)
    _, ys = lax.scan(step, h0, jnp.transpose(x, (1, 0, 2)))
    return jnp.transpose(ys, (1, 0, 2))


if __name__ == "__main__":
    key = jax.random.PRNGKey(0)
    k_param, k_x = jax.random.split(key)

    B, T, I = 2, 8, 2          # batch=2, seq=8, input features=2
    params = init_params(k_param, input_size=I, hidden_size=64, out_size=2)
    x = jax.random.normal(k_x, (B, T, I), dtype=jnp.float32)

    out = rnn_forward(x, params)
    out = jax.block_until_ready(out)

    ref = jax.block_until_ready(rnn_forward_ref(x, params))
    assert out.shape == (B, T, 2)
    assert jnp.allclose(out, ref, atol=1e-4, rtol=1e-4)

    print("KERNEL_OK")
</pallas_src>

<mosaic_0001>
module attributes {stable_mosaic.version = 11 : i64} {
  func.func @rnn_fc_kernel(%arg0: memref<8x8x2xf32, #tpu.memory_space<vmem>>, %arg1: memref<2x64xf32, #tpu.memory_space<vmem>>, %arg2: memref<64x64xf32, #tpu.memory_space<vmem>>, %arg3: memref<1x64xf32, #tpu.memory_space<vmem>>, %arg4: memref<64x2xf32, #tpu.memory_space<vmem>>, %arg5: memref<1x2xf32, #tpu.memory_space<vmem>>, %arg6: memref<8x8x2xf32, #tpu.memory_space<vmem>>, %arg7: memref<64x64xf32, #tpu.memory_space<vmem>>) attributes {dimension_semantics = [], scalar_prefetch = 0 : i64, scratch_operands = 1 : i64, tpu.core_type = #tpu.core_type<tc>} {
    %c0 = arith.constant 0 : index
    %c0_0 = arith.constant 0 : index
    %c0_1 = arith.constant 0 : index
    %0 = vector.load %arg0[%c0, %c0_0, %c0_1] : memref<8x8x2xf32, #tpu.memory_space<vmem>>, vector<8x8x2xf32>
    %1 = vector.shape_cast %0 : vector<8x8x2xf32> to vector<64x2xf32>
    %c0_2 = arith.constant 0 : index
    %c0_3 = arith.constant 0 : index
    %2 = vector.load %arg1[%c0_2, %c0_3] : memref<2x64xf32, #tpu.memory_space<vmem>>, vector<2x64xf32>
    %cst = arith.constant dense<0.000000e+00> : vector<64x64xf32>
    %3 = tpu.matmul %1, %2, %cst {dimension_numbers = #tpu.dot_dimension_numbers<[1], [0], [0], [1], [0, 0, 1, 1], [], []>} : vector<64x2xf32>, vector<2x64xf32>, vector<64x64xf32> -> vector<64x64xf32>
    %c0_4 = arith.constant 0 : index
    %c0_5 = arith.constant 0 : index
    %4 = vector.load %arg3[%c0_4, %c0_5] : memref<1x64xf32, #tpu.memory_space<vmem>>, vector<1x64xf32>
    %5 = vector.broadcast %4 : vector<1x64xf32> to vector<64x64xf32>
    %6 = arith.addf %3, %5 : vector<64x64xf32>
    %7 = vector.shape_cast %6 : vector<64x64xf32> to vector<8x8x64xf32>
    %c0_6 = arith.constant 0 : index
    %c0_7 = arith.constant 0 : index
    %8 = vector.load %arg2[%c0_6, %c0_7] : memref<64x64xf32, #tpu.memory_space<vmem>>, vector<64x64xf32>
    %9 = vector.extract_strided_slice %7 {offsets = [0, 0, 0], sizes = [1, 8, 64], strides = [1, 1, 1]} : vector<8x8x64xf32> to vector<1x8x64xf32>
    %10 = vector.shape_cast %9 : vector<1x8x64xf32> to vector<8x64xf32>
    %11 = math.tanh %10 : vector<8x64xf32>
    %c0_8 = arith.constant 0 : index
    %c0_9 = arith.constant 0 : index
    %12 = vector.load %arg7[%c0_8, %c0_9] : memref<64x64xf32, #tpu.memory_space<vmem>>, vector<8x64xf32>
    tpu.vector_store %arg7[%c0_8, %c0_9], %11 {strides = array<i32>} : memref<64x64xf32, #tpu.memory_space<vmem>>, vector<8x64xf32>,
    %13 = vector.extract_strided_slice %7 {offsets = [1, 0, 0], sizes = [1, 8, 64], strides = [1, 1, 1]} : vector<8x8x64xf32> to vector<1x8x64xf32>
    %14 = vector.shape_cast %13 : vector<1x8x64xf32> to vector<8x64xf32>
    %cst_10 = arith.constant dense<0.000000e+00> : vector<8x64xf32>
    %15 = tpu.matmul %11, %8, %cst_10 {dimension_numbers = #tpu.dot_dimension_numbers<[1], [0], [0], [1], [0, 0, 1, 1], [], []>} : vector<8x64xf32>, vector<64x64xf32>, vector<8x64xf32> -> vector<8x64xf32>
    %16 = arith.addf %14, %15 : vector<8x64xf32>
    %17 = math.tanh %16 : vector<8x64xf32>
    %c8 = arith.constant 8 : index
    %c0_11 = arith.constant 0 : index
    %18 = vector.load %arg7[%c8, %c0_11] : memref<64x64xf32, #tpu.memory_space<vmem>>, vector<8x64xf32>
    tpu.vector_store %arg7[%c8, %c0_11], %17 {strides = array<i32>} : memref<64x64xf32, #tpu.memory_space<vmem>>, vector<8x64xf32>,
    %19 = vector.extract_strided_slice %7 {offsets = [2, 0, 0], sizes = [1, 8, 64], strides = [1, 1, 1]} : vector<8x8x64xf32> to vector<1x8x64xf32>
    %20 = vector.shape_cast %19 : vector<1x8x64xf32> to vector<8x64xf32>
    %cst_12 = arith.constant dense<0.000000e+00> : vector<8x64xf32>
    %21 = tpu.matmul %17, %8, %cst_12 {dimension_numbers = #tpu.dot_dimension_numbers<[1], [0], [0], [1], [0, 0, 1, 1], [], []>} : vector<8x64xf32>, vector<64x64xf32>, vector<8x64xf32> -> vector<8x64xf32>
    %22 = arith.addf %20, %21 : vector<8x64xf32>
    %23 = math.tanh %22 : vector<8x64xf32>
    %c16 = arith.constant 16 : index
    %c0_13 = arith.constant 0 : index
    %24 = vector.load %arg7[%c16, %c0_13] : memref<64x64xf32, #tpu.memory_space<vmem>>, vector<8x64xf32>
    tpu.vector_store %arg7[%c16, %c0_13], %23 {strides = array<i32>} : memref<64x64xf32, #tpu.memory_space<vmem>>, vector<8x64xf32>,
    %25 = vector.extract_strided_slice %7 {offsets = [3, 0, 0], sizes = [1, 8, 64], strides = [1, 1, 1]} : vector<8x8x64xf32> to vector<1x8x64xf32>
    %26 = vector.shape_cast %25 : vector<1x8x64xf32> to vector<8x64xf32>
    %cst_14 = arith.constant dense<0.000000e+00> : vector<8x64xf32>
    %27 = tpu.matmul %23, %8, %cst_14 {dimension_numbers = #tpu.dot_dimension_numbers<[1], [0], [0], [1], [0, 0, 1, 1], [], []>} : vector<8x64xf32>, vector<64x64xf32>, vector<8x64xf32> -> vector<8x64xf32>
    %28 = arith.addf %26, %27 : vector<8x64xf32>
    %29 = math.tanh %28 : vector<8x64xf32>
    %c24 = arith.constant 24 : index
    %c0_15 = arith.constant 0 : index
    %30 = vector.load %arg7[%c24, %c0_15] : memref<64x64xf32, #tpu.memory_space<vmem>>, vector<8x64xf32>
    tpu.vector_store %arg7[%c24, %c0_15], %29 {strides = array<i32>} : memref<64x64xf32, #tpu.memory_space<vmem>>, vector<8x64xf32>,
    %31 = vector.extract_strided_slice %7 {offsets = [4, 0, 0], sizes = [1, 8, 64], strides = [1, 1, 1]} : vector<8x8x64xf32> to vector<1x8x64xf32>
    %32 = vector.shape_cast %31 : vector<1x8x64xf32> to vector<8x64xf32>
    %cst_16 = arith.constant dense<0.000000e+00> : vector<8x64xf32>
    %33 = tpu.matmul %29, %8, %cst_16 {dimension_numbers = #tpu.dot_dimension_numbers<[1], [0], [0], [1], [0, 0, 1, 1], [], []>} : vector<8x64xf32>, vector<64x64xf32>, vector<8x64xf32> -> vector<8x64xf32>
    %34 = arith.addf %32, %33 : vector<8x64xf32>
    %35 = math.tanh %34 : vector<8x64xf32>
    %c32 = arith.constant 32 : index
    %c0_17 = arith.constant 0 : index
    %36 = vector.load %arg7[%c32, %c0_17] : memref<64x64xf32, #tpu.memory_space<vmem>>, vector<8x64xf32>
    tpu.vector_store %arg7[%c32, %c0_17], %35 {strides = array<i32>} : memref<64x64xf32, #tpu.memory_space<vmem>>, vector<8x64xf32>,
    %37 = vector.extract_strided_slice %7 {offsets = [5, 0, 0], sizes = [1, 8, 64], strides = [1, 1, 1]} : vector<8x8x64xf32> to vector<1x8x64xf32>
    %38 = vector.shape_cast %37 : vector<1x8x64xf32> to vector<8x64xf32>
    %cst_18 = arith.constant dense<0.000000e+00> : vector<8x64xf32>
    %39 = tpu.matmul %35, %8, %cst_18 {dimension_numbers = #tpu.dot_dimension_numbers<[1], [0], [0], [1], [0, 0, 1, 1], [], []>} : vector<8x64xf32>, vector<64x64xf32>, vector<8x64xf32> -> vector<8x64xf32>
    %40 = arith.addf %38, %39 : vector<8x64xf32>
    %41 = math.tanh %40 : vector<8x64xf32>
    %c40 = arith.constant 40 : index
    %c0_19 = arith.constant 0 : index
    %42 = vector.load %arg7[%c40, %c0_19] : memref<64x64xf32, #tpu.memory_space<vmem>>, vector<8x64xf32>
    tpu.vector_store %arg7[%c40, %c0_19], %41 {strides = array<i32>} : memref<64x64xf32, #tpu.memory_space<vmem>>, vector<8x64xf32>,
    %43 = vector.extract_strided_slice %7 {offsets = [6, 0, 0], sizes = [1, 8, 64], strides = [1, 1, 1]} : vector<8x8x64xf32> to vector<1x8x64xf32>
    %44 = vector.shape_cast %43 : vector<1x8x64xf32> to vector<8x64xf32>
    %cst_20 = arith.constant dense<0.000000e+00> : vector<8x64xf32>
    %45 = tpu.matmul %41, %8, %cst_20 {dimension_numbers = #tpu.dot_dimension_numbers<[1], [0], [0], [1], [0, 0, 1, 1], [], []>} : vector<8x64xf32>, vector<64x64xf32>, vector<8x64xf32> -> vector<8x64xf32>
    %46 = arith.addf %44, %45 : vector<8x64xf32>
    %47 = math.tanh %46 : vector<8x64xf32>
    %c48 = arith.constant 48 : index
    %c0_21 = arith.constant 0 : index
    %48 = vector.load %arg7[%c48, %c0_21] : memref<64x64xf32, #tpu.memory_space<vmem>>, vector<8x64xf32>
    tpu.vector_store %arg7[%c48, %c0_21], %47 {strides = array<i32>} : memref<64x64xf32, #tpu.memory_space<vmem>>, vector<8x64xf32>,
    %49 = vector.extract_strided_slice %7 {offsets = [7, 0, 0], sizes = [1, 8, 64], strides = [1, 1, 1]} : vector<8x8x64xf32> to vector<1x8x64xf32>
    %50 = vector.shape_cast %49 : vector<1x8x64xf32> to vector<8x64xf32>
    %cst_22 = arith.constant dense<0.000000e+00> : vector<8x64xf32>
    %51 = tpu.matmul %47, %8, %cst_22 {dimension_numbers = #tpu.dot_dimension_numbers<[1], [0], [0], [1], [0, 0, 1, 1], [], []>} : vector<8x64xf32>, vector<64x64xf32>, vector<8x64xf32> -> vector<8x64xf32>
    %52 = arith.addf %50, %51 : vector<8x64xf32>
    %53 = math.tanh %52 : vector<8x64xf32>
    %c56 = arith.constant 56 : index
    %c0_23 = arith.constant 0 : index
    %54 = vector.load %arg7[%c56, %c0_23] : memref<64x64xf32, #tpu.memory_space<vmem>>, vector<8x64xf32>
    tpu.vector_store %arg7[%c56, %c0_23], %53 {strides = array<i32>} : memref<64x64xf32, #tpu.memory_space<vmem>>, vector<8x64xf32>,
    %c0_24 = arith.constant 0 : index
    %c0_25 = arith.constant 0 : index
    %55 = vector.load %arg7[%c0_24, %c0_25] : memref<64x64xf32, #tpu.memory_space<vmem>>, vector<64x64xf32>
    %c0_26 = arith.constant 0 : index
    %c0_27 = arith.constant 0 : index
    %56 = vector.load %arg4[%c0_26, %c0_27] : memref<64x2xf32, #tpu.memory_space<vmem>>, vector<64x2xf32>
    %cst_28 = arith.constant dense<0.000000e+00> : vector<64x2xf32>
    %57 = tpu.matmul %55, %56, %cst_28 {dimension_numbers = #tpu.dot_dimension_numbers<[1], [0], [0], [1], [0, 0, 1, 1], [], []>} : vector<64x64xf32>, vector<64x2xf32>, vector<64x2xf32> -> vector<64x2xf32>
    %c0_29 = arith.constant 0 : index
    %c0_30 = arith.constant 0 : index
    %58 = vector.load %arg5[%c0_29, %c0_30] : memref<1x2xf32, #tpu.memory_space<vmem>>, vector<1x2xf32>
    %59 = vector.broadcast %58 : vector<1x2xf32> to vector<64x2xf32>
    %60 = arith.addf %57, %59 : vector<64x2xf32>
    %61 = vector.shape_cast %60 : vector<64x2xf32> to vector<8x8x2xf32>
    %c0_31 = arith.constant 0 : index
    %c0_32 = arith.constant 0 : index
    %c0_33 = arith.constant 0 : index
    %62 = vector.load %arg6[%c0_31, %c0_32, %c0_33] : memref<8x8x2xf32, #tpu.memory_space<vmem>>, vector<8x8x2xf32>
    tpu.vector_store %arg6[%c0_31, %c0_32, %c0_33], %61 {strides = array<i32>} : memref<8x8x2xf32, #tpu.memory_space<vmem>>, vector<8x8x2xf32>,
    return
  }
}

</mosaic_0001>

<llo_original>
// kernel: rnn_forward.1
$region0: #{rnn_forward.1}
  #allocation0 [shape = 'u32[]', space=smem, size = 0x4, offset = 0x4, fixed_abs, tag = 'smem constant byte address 0x4 - core index']
  #allocation1 [shape = 'u32[144,128]{1,0:T(1,128)}', space=vmem, size = 0x12000, scoped, tag = 'internal scratch']
  #allocation2 [shape = 'f32[64,64]{1,0:T(8,128)}', space=vmem, size = 0x8000, scoped, tag = 'scratch operand']
  %s0 = inlined_call_operand.vmem [shape: f32[8,8,2], index: 0, kind: input, shape index: {}]
  %s1 = inlined_call_operand.vmem [shape: f32[2,64], index: 1, kind: input, shape index: {}]
  %s2 = inlined_call_operand.vmem [shape: f32[64,64], index: 2, kind: input, shape index: {}]
  %s3 = inlined_call_operand.vmem [shape: f32[1,64], index: 3, kind: input, shape index: {}]
  %s4 = inlined_call_operand.vmem [shape: f32[64,2], index: 4, kind: input, shape index: {}]
  %s5 = inlined_call_operand.vmem [shape: f32[1,2], index: 5, kind: input, shape index: {}]
  %s6 = inlined_call_operand.vmem [shape: f32[8,8,2], index: 6, kind: output, shape index: {}]
  %s7 = sld [smem:[#allocation0]]
  $region34: #{rnn_forward.1} parent=0
    _
  %s9 = ssub.s32 1, %s7
  %s10 = scalar_select 0, %s9, %s7
  // Predicated region
  $region2: #{rnn_forward.1} parent=0 // pred_check
    _
  $region3: #{rnn_forward.1} parent=0 // pred_check_branch
    %12 = sbr.rel (0) target = $region5
  $region4: #{rnn_forward.1} parent=0 // pred_region
    _
  $region5: #{rnn_forward.1} parent=0 // pred_fallthru
    _
  // Predicated region
  $region6: #{rnn_forward.1} parent=0 // pred_check
    _
  $region7: #{rnn_forward.1} parent=0 // pred_check_branch
    %14 = sbr.rel (0) target = $region9
  $region8: #{rnn_forward.1} parent=0 // pred_region
    _
  $region9: #{rnn_forward.1} parent=0 // pred_fallthru
    _
  // Predicated region
  $region10: #{rnn_forward.1} parent=0 // pred_check
    _
  $region11: #{rnn_forward.1} parent=0 // pred_check_branch
    %16 = sbr.rel (0) target = $region13
  $region12: #{rnn_forward.1} parent=0 // pred_region
    _
  $region13: #{rnn_forward.1} parent=0 // pred_fallthru
    _
  // Predicated region
  $region14: #{rnn_forward.1} parent=0 // pred_check
    _
  $region15: #{rnn_forward.1} parent=0 // pred_check_branch
    %18 = sbr.rel (0) target = $region17
  $region16: #{rnn_forward.1} parent=0 // pred_region
    _
  $region17: #{rnn_forward.1} parent=0 // pred_fallthru
    _
  // Predicated region
  $region18: #{rnn_forward.1} parent=0 // pred_check
    _
  $region19: #{rnn_forward.1} parent=0 // pred_check_branch
    %20 = sbr.rel (0) target = $region21
  $region20: #{rnn_forward.1} parent=0 // pred_region
    _
  $region21: #{rnn_forward.1} parent=0 // pred_fallthru
    _
  // Predicated region
  $region22: #{rnn_forward.1} parent=0 // pred_check
    _
  $region23: #{rnn_forward.1} parent=0 // pred_check_branch
    %22 = sbr.rel (0) target = $region25
  $region24: #{rnn_forward.1} parent=0 // pred_region
    _
  $region25: #{rnn_forward.1} parent=0 // pred_fallthru
    _
  %v23 = vld [vmem:[%s0] sm:$0xff]
  %v24 = vld [vmem:[%s0 + $0x8] sm:$0xff]
  %v25 = vld [vmem:[%s0 + $0x10] sm:$0xff]
  %v26 = vld [vmem:[%s0 + $0x18] sm:$0xff]
  %v27 = vld [vmem:[%s0 + $0x20] sm:$0xff]
  %v28 = vld [vmem:[%s0 + $0x28] sm:$0xff]
  %v29 = vld [vmem:[%s0 + $0x30] sm:$0xff]
  %v30 = vld [vmem:[%s0 + $0x38] sm:$0xff]
  %v31 = vld [vmem:[%s1] sm:$0x3]
  %v32 = vld [vmem:[%s3] sm:$0x1]
  %v34 = vlaneseq
  %v35 = vshrl.u32 %v34, 7
  %v36 = vsub.s32 0, %v35
  %v37 = vrot.slane %v32, %v36
  %vm39 = vcmask 15360
  %v41 = vsel %vm39, %v23, 0
  %v44 = vsel %vm39, %v24, 0
  %v47 = vsel %vm39, %v25, 0
  %v50 = vsel %vm39, %v26, 0
  %v53 = vsel %vm39, %v27, 0
  %v56 = vsel %vm39, %v28, 0
  %v59 = vsel %vm39, %v29, 0
  %v62 = vsel %vm39, %v30, 0
  %vm64 = vcmask 1041408
  %v66 = vsel %vm64, %v31, 0
  %68 = vmatprep.subr.mxu0 0.0
  %69 = vmatpush1.msra.mxu0 0.0
  %70 = vmatprep.subr.mxu0 0.0
  %71 = vmatpush1.msra.mxu0 0.0
  %72 = vmatprep.subr.mxu0 0.0
  %73 = vmatpush1.msra.mxu0 0.0
  %74 = vmatprep.subr.mxu0 0.0
  %75 = vmatpush1.msra.mxu0 0.0
  %76 = vmatprep.subr.mxu0 0.0
  %77 = vmatpush1.msra.mxu0 0.0
  %78 = vmatprep.subr.mxu0 0.0
  %79 = vmatpush1.msra.mxu0 0.0
  %80 = vmatprep.subr.mxu0 0.0
  %81 = vmatpush1.msra.mxu0 0.0
  %82 = vmatprep.subr.mxu0 0.0
  %83 = vmatpush1.msra.mxu0 0.0
  %84 = vmatprep.subr.mxu0 0.0
  %85 = vmatpush1.msra.mxu0 0.0
  %86 = vmatprep.subr.mxu0 0.0
  %87 = vmatpush1.msra.mxu0 0.0
  %88 = vmatprep.subr.mxu0 0.0
  %89 = vmatpush1.msra.mxu0 0.0
  %90 = vmatprep.subr.mxu0 0.0
  %91 = vmatpush1.msra.mxu0 0.0
  %92 = vmatprep.subr.mxu0 0.0
  %93 = vmatpush1.msra.mxu0 0.0
  %94 = vmatprep.subr.mxu0 0.0
  %95 = vmatpush1.msra.mxu0 0.0
  %96 = vmatprep.subr.mxu0 0.0
  %97 = vmatpush1.msra.mxu0 0.0
  %98 = vmatprep.subr.mxu0 0.0
  %99 = vmatpush1.msra.mxu0 %v66
  %100 = vmatprep.subr.mxu0 0.0
  %101 = vmatpush2.msra.mxu0 0.0
  %102 = vmatprep.subr.mxu0 0.0
  %103 = vmatpush2.msra.mxu0 0.0
  %104 = vmatprep.subr.mxu0 0.0
  %105 = vmatpush2.msra.mxu0 0.0
  %106 = vmatprep.subr.mxu0 0.0
  %107 = vmatpush2.msra.mxu0 0.0
  %108 = vmatprep.subr.mxu0 0.0
  %109 = vmatpush2.msra.mxu0 0.0
  %110 = vmatprep.subr.mxu0 0.0
  %111 = vmatpush2.msra.mxu0 0.0
  %112 = vmatprep.subr.mxu0 0.0
  %113 = vmatpush2.msra.mxu0 0.0
  %114 = vmatprep.subr.mxu0 0.0
  %115 = vmatpush2.msra.mxu0 0.0
  %116 = vmatprep.subr.mxu0 0.0
  %117 = vmatpush2.msra.mxu0 0.0
  %118 = vmatprep.subr.mxu0 0.0
  %119 = vmatpush2.msra.mxu0 0.0
  %120 = vmatprep.subr.mxu0 0.0
  %121 = vmatpush2.msra.mxu0 0.0
  %122 = vmatprep.subr.mxu0 0.0
  %123 = vmatpush2.msra.mxu0 0.0
  %124 = vmatprep.subr.mxu0 0.0
  %125 = vmatpush2.msra.mxu0 0.0
  %126 = vmatprep.subr.mxu0 0.0
  %127 = vmatpush2.msra.mxu0 0.0
  %128 = vmatprep.subr.mxu0 0.0
  %129 = vmatpush2.msra.mxu0 0.0
  %130 = vmatprep.subr.mxu0 0.0
  %131 = vmatpush2.msra.mxu0 0.0
  %132 = vmatprep.mubr.f32.mxu0 0.0
  %133 = vmatmul.mubr.f32.gmra.mxu0 %v41
  %v134 = vpop.f32.mrf.mxu0
  %v135 = vadd.f32 %v37, %v134
  %v136 = vpop.f32.mrf.mxu0
  %137 = vmatprep.mubr.f32.mxu0 0.0
  %138 = vmatmul.mubr.f32.gmra.mxu0 %v44
  %v139 = vpop.f32.mrf.mxu0
  %v140 = vadd.f32 %v37, %v139
  %v141 = vpop.f32.mrf.mxu0
  %142 = vmatprep.mubr.f32.mxu0 0.0
  %143 = vmatmul.mubr.f32.gmra.mxu0 %v47
  %v144 = vpop.f32.mrf.mxu0
  %v145 = vadd.f32 %v37, %v144
  %v146 = vpop.f32.mrf.mxu0
  %147 = vmatprep.mubr.f32.mxu0 0.0
  %148 = vmatmul.mubr.f32.gmra.mxu0 %v50
  %v149 = vpop.f32.mrf.mxu0
  %v150 = vadd.f32 %v37, %v149
  %v151 = vpop.f32.mrf.mxu0
  %152 = vmatprep.mubr.f32.mxu0 0.0
  %153 = vmatmul.mubr.f32.gmra.mxu0 %v53
  %v154 = vpop.f32.mrf.mxu0
  %v155 = vadd.f32 %v37, %v154
  %v156 = vpop.f32.mrf.mxu0
  %157 = vmatprep.mubr.f32.mxu0 0.0
  %158 = vmatmul.mubr.f32.gmra.mxu0 %v56
  %v159 = vpop.f32.mrf.mxu0
  %v160 = vadd.f32 %v37, %v159
  %v161 = vpop.f32.mrf.mxu0
  %162 = vmatprep.mubr.f32.mxu0 0.0
  %163 = vmatmul.mubr.f32.gmra.mxu0 %v59
  %v164 = vpop.f32.mrf.mxu0
  %v165 = vadd.f32 %v37, %v164
  %v166 = vpop.f32.mrf.mxu0
  %167 = vmatprep.mubr.f32.mxu0 0.0
  %168 = vmatmul.mubr.f32.gmra.mxu0 %v62
  %v169 = vpop.f32.mrf.mxu0
  %v170 = vadd.f32 %v37, %v169
  %v171 = vpop.f32.mrf.mxu0
  %172 = vdwg.mxu0
  %v173 = vld [vmem:[%s2] sm:$0xff]
  %v174 = vld [vmem:[%s2 + $0x8] sm:$0xff]
  %v175 = vld [vmem:[%s2 + $0x10] sm:$0xff]
  %v176 = vld [vmem:[%s2 + $0x18] sm:$0xff]
  %v177 = vld [vmem:[%s2 + $0x20] sm:$0xff]
  %v178 = vld [vmem:[%s2 + $0x28] sm:$0xff]
  %v179 = vld [vmem:[%s2 + $0x30] sm:$0xff]
  %v180 = vld [vmem:[%s2 + $0x38] sm:$0xff]
  %v181 = vtanh.pop %v135
  %vm182 = vcmask 523264
  %183 = vst.msk [vmem:[#allocation2] sm:$0xff] %vm182, %v181
  %v185 = vsel %vm182, %v181, 0
  %187 = vmatprep.subr.mxu0 0.0
  %188 = vmatpush1.msra.mxu0 0.0
  %189 = vmatprep.subr.mxu0 0.0
  %190 = vmatpush1.msra.mxu0 0.0
  %191 = vmatprep.subr.mxu0 0.0
  %192 = vmatpush1.msra.mxu0 0.0
  %193 = vmatprep.subr.mxu0 0.0
  %194 = vmatpush1.msra.mxu0 0.0
  %195 = vmatprep.subr.mxu0 0.0
  %196 = vmatpush1.msra.mxu0 0.0
  %197 = vmatprep.subr.mxu0 0.0
  %198 = vmatpush1.msra.mxu0 0.0
  %199 = vmatprep.subr.mxu0 0.0
  %200 = vmatpush1.msra.mxu0 0.0
  %201 = vmatprep.subr.mxu0 0.0
  %202 = vmatpush1.msra.mxu0 0.0
  %203 = vmatprep.subr.mxu0 0.0
  %204 = vmatpush1.msra.mxu0 %v180
  %205 = vmatprep.subr.mxu0 0.0
  %206 = vmatpush1.msra.mxu0 %v179
  %207 = vmatprep.subr.mxu0 0.0
  %208 = vmatpush1.msra.mxu0 %v178
  %209 = vmatprep.subr.mxu0 0.0
  %210 = vmatpush1.msra.mxu0 %v177
  %211 = vmatprep.subr.mxu0 0.0
  %212 = vmatpush1.msra.mxu0 %v176
  %213 = vmatprep.subr.mxu0 0.0
  %214 = vmatpush1.msra.mxu0 %v175
  %215 = vmatprep.subr.mxu0 0.0
  %216 = vmatpush1.msra.mxu0 %v174
  %217 = vmatprep.subr.mxu0 0.0
  %218 = vmatpush1.msra.mxu0 %v173
  %219 = vmatprep.subr.mxu0 0.0
  %220 = vmatpush2.msra.mxu0 0.0
  %221 = vmatprep.subr.mxu0 0.0
  %222 = vmatpush2.msra.mxu0 0.0
  %223 = vmatprep.subr.mxu0 0.0
  %224 = vmatpush2.msra.mxu0 0.0
  %225 = vmatprep.subr.mxu0 0.0
  %226 = vmatpush2.msra.mxu0 0.0
  %227 = vmatprep.subr.mxu0 0.0
  %228 = vmatpush2.msra.mxu0 0.0
  %229 = vmatprep.subr.mxu0 0.0
  %230 = vmatpush2.msra.mxu0 0.0
  %231 = vmatprep.subr.mxu0 0.0
  %232 = vmatpush2.msra.mxu0 0.0
  %233 = vmatprep.subr.mxu0 0.0
  %234 = vmatpush2.msra.mxu0 0.0
  %235 = vmatprep.subr.mxu0 0.0
  %236 = vmatpush2.msra.mxu0 0.0
  %237 = vmatprep.subr.mxu0 0.0
  %238 = vmatpush2.msra.mxu0 0.0
  %239 = vmatprep.subr.mxu0 0.0
  %240 = vmatpush2.msra.mxu0 0.0
  %241 = vmatprep.subr.mxu0 0.0
  %242 = vmatpush2.msra.mxu0 0.0
  %243 = vmatprep.subr.mxu0 0.0
  %244 = vmatpush2.msra.mxu0 0.0
  %245 = vmatprep.subr.mxu0 0.0
  %246 = vmatpush2.msra.mxu0 0.0
  %247 = vmatprep.subr.mxu0 0.0
  %248 = vmatpush2.msra.mxu0 0.0
  %249 = vmatprep.subr.mxu0 0.0
  %250 = vmatpush2.msra.mxu0 0.0
  %251 = vmatprep.mubr.f32.mxu0 0.0
  %252 = vmatmul.mubr.f32.gmra.mxu0 %v185
  %v253 = vpop.f32.mrf.mxu0
  %v254 = vadd.f32 0.0, %v253
  %v255 = vpop.f32.mrf.mxu0
  %256 = vdwg.mxu0
  %v257 = vadd.f32 %v140, %v254
  %v258 = vtanh.pop %v257
  %259 = vst.msk [vmem:[#allocation2 + $0x8] sm:$0xff] %vm182, %v258
  %v261 = vsel %vm182, %v258, 0
  %263 = vmatprep.subr.mxu0 0.0
  %264 = vmatpush1.msra.mxu0 0.0
  %265 = vmatprep.subr.mxu0 0.0
  %266 = vmatpush1.msra.mxu0 0.0
  %267 = vmatprep.subr.mxu0 0.0
  %268 = vmatpush1.msra.mxu0 0.0
  %269 = vmatprep.subr.mxu0 0.0
  %270 = vmatpush1.msra.mxu0 0.0
  %271 = vmatprep.subr.mxu0 0.0
  %272 = vmatpush1.msra.mxu0 0.0
  %273 = vmatprep.subr.mxu0 0.0
  %274 = vmatpush1.msra.mxu0 0.0
  %275 = vmatprep.subr.mxu0 0.0
  %276 = vmatpush1.msra.mxu0 0.0
  %277 = vmatprep.subr.mxu0 0.0
  %278 = vmatpush1.msra.mxu0 0.0
  %279 = vmatprep.subr.mxu0 0.0
  %280 = vmatpush1.msra.mxu0 %v180
  %281 = vmatprep.subr.mxu0 0.0
  %282 = vmatpush1.msra.mxu0 %v179
  %283 = vmatprep.subr.mxu0 0.0
  %284 = vmatpush1.msra.mxu0 %v178
  %285 = vmatprep.subr.mxu0 0.0
  %286 = vmatpush1.msra.mxu0 %v177
  %287 = vmatprep.subr.mxu0 0.0
  %288 = vmatpush1.msra.mxu0 %v176
  %289 = vmatprep.subr.mxu0 0.0
  %290 = vmatpush1.msra.mxu0 %v175
  %291 = vmatprep.subr.mxu0 0.0
  %292 = vmatpush1.msra.mxu0 %v174
  %293 = vmatprep.subr.mxu0 0.0
  %294 = vmatpush1.msra.mxu0 %v173
  %295 = vmatprep.subr.mxu0 0.0
  %296 = vmatpush2.msra.mxu0 0.0
  %297 = vmatprep.subr.mxu0 0.0
  %298 = vmatpush2.msra.mxu0 0.0
  %299 = vmatprep.subr.mxu0 0.0
  %300 = vmatpush2.msra.mxu0 0.0
  %301 = vmatprep.subr.mxu0 0.0
  %302 = vmatpush2.msra.mxu0 0.0
  %303 = vmatprep.subr.mxu0 0.0
  %304 = vmatpush2.msra.mxu0 0.0
  %305 = vmatprep.subr.mxu0 0.0
  %306 = vmatpush2.msra.mxu0 0.0
  %307 = vmatprep.subr.mxu0 0.0
  %308 = vmatpush2.msra.mxu0 0.0
  %309 = vmatprep.subr.mxu0 0.0
  %310 = vmatpush2.msra.mxu0 0.0
  %311 = vmatprep.subr.mxu0 0.0
  %312 = vmatpush2.msra.mxu0 0.0
  %313 = vmatprep.subr.mxu0 0.0
  %314 = vmatpush2.msra.mxu0 0.0
  %315 = vmatprep.subr.mxu0 0.0
  %316 = vmatpush2.msra.mxu0 0.0
  %317 = vmatprep.subr.mxu0 0.0
  %318 = vmatpush2.msra.mxu0 0.0
  %319 = vmatprep.subr.mxu0 0.0
  %320 = vmatpush2.msra.mxu0 0.0
  %321 = vmatprep.subr.mxu0 0.0
  %322 = vmatpush2.msra.mxu0 0.0
  %323 = vmatprep.subr.mxu0 0.0
  %324 = vmatpush2.msra.mxu0 0.0
  %325 = vmatprep.subr.mxu0 0.0
  %326 = vmatpush2.msra.mxu0 0.0
  %327 = vmatprep.mubr.f32.mxu0 0.0
  %328 = vmatmul.mubr.f32.gmra.mxu0 %v261
  %v329 = vpop.f32.mrf.mxu0
  %v330 = vadd.f32 0.0, %v329
  %v331 = vpop.f32.mrf.mxu0
  %332 = vdwg.mxu0
  %v333 = vadd.f32 %v145, %v330
  %v334 = vtanh.pop %v333
  %335 = vst.msk [vmem:[#allocation2 + $0x10] sm:$0xff] %vm182, %v334
  %v337 = vsel %vm182, %v334, 0
  %339 = vmatprep.subr.mxu0 0.0
  %340 = vmatpush1.msra.mxu0 0.0
  %341 = vmatprep.subr.mxu0 0.0
  %342 = vmatpush1.msra.mxu0 0.0
  %343 = vmatprep.subr.mxu0 0.0
  %344 = vmatpush1.msra.mxu0 0.0
  %345 = vmatprep.subr.mxu0 0.0
  %346 = vmatpush1.msra.mxu0 0.0
  %347 = vmatprep.subr.mxu0 0.0
  %348 = vmatpush1.msra.mxu0 0.0
  %349 = vmatprep.subr.mxu0 0.0
  %350 = vmatpush1.msra.mxu0 0.0
  %351 = vmatprep.subr.mxu0 0.0
  %352 = vmatpush1.msra.mxu0 0.0
  %353 = vmatprep.subr.mxu0 0.0
  %354 = vmatpush1.msra.mxu0 0.0
  %355 = vmatprep.subr.mxu0 0.0
  %356 = vmatpush1.msra.mxu0 %v180
  %357 = vmatprep.subr.mxu0 0.0
  %358 = vmatpush1.msra.mxu0 %v179
  %359 = vmatprep.subr.mxu0 0.0
  %360 = vmatpush1.msra.mxu0 %v178
  %361 = vmatprep.subr.mxu0 0.0
  %362 = vmatpush1.msra.mxu0 %v177
  %363 = vmatprep.subr.mxu0 0.0
  %364 = vmatpush1.msra.mxu0 %v176
  %365 = vmatprep.subr.mxu0 0.0
  %366 = vmatpush1.msra.mxu0 %v175
  %367 = vmatprep.subr.mxu0 0.0
  %368 = vmatpush1.msra.mxu0 %v174
  %369 = vmatprep.subr.mxu0 0.0
  %370 = vmatpush1.msra.mxu0 %v173
  %371 = vmatprep.subr.mxu0 0.0
  %372 = vmatpush2.msra.mxu0 0.0
  %373 = vmatprep.subr.mxu0 0.0
  %374 = vmatpush2.msra.mxu0 0.0
  %375 = vmatprep.subr.mxu0 0.0
  %376 = vmatpush2.msra.mxu0 0.0
  %377 = vmatprep.subr.mxu0 0.0
  %378 = vmatpush2.msra.mxu0 0.0
  %379 = vmatprep.subr.mxu0 0.0
  %380 = vmatpush2.msra.mxu0 0.0
  %381 = vmatprep.subr.mxu0 0.0
  %382 = vmatpush2.msra.mxu0 0.0
  %383 = vmatprep.subr.mxu0 0.0
  %384 = vmatpush2.msra.mxu0 0.0
  %385 = vmatprep.subr.mxu0 0.0
  %386 = vmatpush2.msra.mxu0 0.0
  %387 = vmatprep.subr.mxu0 0.0
  %388 = vmatpush2.msra.mxu0 0.0
  %389 = vmatprep.subr.mxu0 0.0
  %390 = vmatpush2.msra.mxu0 0.0
  %391 = vmatprep.subr.mxu0 0.0
  %392 = vmatpush2.msra.mxu0 0.0
  %393 = vmatprep.subr.mxu0 0.0
  %394 = vmatpush2.msra.mxu0 0.0
  %395 = vmatprep.subr.mxu0 0.0
  %396 = vmatpush2.msra.mxu0 0.0
  %397 = vmatprep.subr.mxu0 0.0
  %398 = vmatpush2.msra.mxu0 0.0
  %399 = vmatprep.subr.mxu0 0.0
  %400 = vmatpush2.msra.mxu0 0.0
  %401 = vmatprep.subr.mxu0 0.0
  %402 = vmatpush2.msra.mxu0 0.0
  %403 = vmatprep.mubr.f32.mxu0 0.0
  %404 = vmatmul.mubr.f32.gmra.mxu0 %v337
  %v405 = vpop.f32.mrf.mxu0
  %v406 = vadd.f32 0.0, %v405
  %v407 = vpop.f32.mrf.mxu0
  %408 = vdwg.mxu0
  %v409 = vadd.f32 %v150, %v406
  %v410 = vtanh.pop %v409
  %411 = vst.msk [vmem:[#allocation2 + $0x18] sm:$0xff] %vm182, %v410
  %v413 = vsel %vm182, %v410, 0
  %415 = vmatprep.subr.mxu0 0.0
  %416 = vmatpush1.msra.mxu0 0.0
  %417 = vmatprep.subr.mxu0 0.0
  %418 = vmatpush1.msra.mxu0 0.0
  %419 = vmatprep.subr.mxu0 0.0
  %420 = vmatpush1.msra.mxu0 0.0
  %421 = vmatprep.subr.mxu0 0.0
  %422 = vmatpush1.msra.mxu0 0.0
  %423 = vmatprep.subr.mxu0 0.0
  %424 = vmatpush1.msra.mxu0 0.0
  %425 = vmatprep.subr.mxu0 0.0
  %426 = vmatpush1.msra.mxu0 0.0
  %427 = vmatprep.subr.mxu0 0.0
  %428 = vmatpush1.msra.mxu0 0.0
  %429 = vmatprep.subr.mxu0 0.0
  %430 = vmatpush1.msra.mxu0 0.0
  %431 = vmatprep.subr.mxu0 0.0
  %432 = vmatpush1.msra.mxu0 %v180
  %433 = vmatprep.subr.mxu0 0.0
  %434 = vmatpush1.msra.mxu0 %v179
  %435 = vmatprep.subr.mxu0 0.0
  %436 = vmatpush1.msra.mxu0 %v178
  %437 = vmatprep.subr.mxu0 0.0
  %438 = vmatpush1.msra.mxu0 %v177
  %439 = vmatprep.subr.mxu0 0.0
  %440 = vmatpush1.msra.mxu0 %v176
  %441 = vmatprep.subr.mxu0 0.0
  %442 = vmatpush1.msra.mxu0 %v175
  %443 = vmatprep.subr.mxu0 0.0
  %444 = vmatpush1.msra.mxu0 %v174
  %445 = vmatprep.subr.mxu0 0.0
  %446 = vmatpush1.msra.mxu0 %v173
  %447 = vmatprep.subr.mxu0 0.0
  %448 = vmatpush2.msra.mxu0 0.0
  %449 = vmatprep.subr.mxu0 0.0
  %450 = vmatpush2.msra.mxu0 0.0
  %451 = vmatprep.subr.mxu0 0.0
  %452 = vmatpush2.msra.mxu0 0.0
  %453 = vmatprep.subr.mxu0 0.0
  %454 = vmatpush2.msra.mxu0 0.0
  %455 = vmatprep.subr.mxu0 0.0
  %456 = vmatpush2.msra.mxu0 0.0
  %457 = vmatprep.subr.mxu0 0.0
  %458 = vmatpush2.msra.mxu0 0.0
  %459 = vmatprep.subr.mxu0 0.0
  %460 = vmatpush2.msra.mxu0 0.0
  %461 = vmatprep.subr.mxu0 0.0
  %462 = vmatpush2.msra.mxu0 0.0
  %463 = vmatprep.subr.mxu0 0.0
  %464 = vmatpush2.msra.mxu0 0.0
  %465 = vmatprep.subr.mxu0 0.0
  %466 = vmatpush2.msra.mxu0 0.0
  %467 = vmatprep.subr.mxu0 0.0
  %468 = vmatpush2.msra.mxu0 0.0
  %469 = vmatprep.subr.mxu0 0.0
  %470 = vmatpush2.msra.mxu0 0.0
  %471 = vmatprep.subr.mxu0 0.0
  %472 = vmatpush2.msra.mxu0 0.0
  %473 = vmatprep.subr.mxu0 0.0
  %474 = vmatpush2.msra.mxu0 0.0
  %475 = vmatprep.subr.mxu0 0.0
  %476 = vmatpush2.msra.mxu0 0.0
  %477 = vmatprep.subr.mxu0 0.0
  %478 = vmatpush2.msra.mxu0 0.0
  %479 = vmatprep.mubr.f32.mxu0 0.0
  %480 = vmatmul.mubr.f32.gmra.mxu0 %v413
  %v481 = vpop.f32.mrf.mxu0
  %v482 = vadd.f32 0.0, %v481
  %v483 = vpop.f32.mrf.mxu0
  %484 = vdwg.mxu0
  %v485 = vadd.f32 %v155, %v482
  %v486 = vtanh.pop %v485
  %487 = vst.msk [vmem:[#allocation2 + $0x20] sm:$0xff] %vm182, %v486
  %v489 = vsel %vm182, %v486, 0
  %491 = vmatprep.subr.mxu0 0.0
  %492 = vmatpush1.msra.mxu0 0.0
  %493 = vmatprep.subr.mxu0 0.0
  %494 = vmatpush1.msra.mxu0 0.0
  %495 = vmatprep.subr.mxu0 0.0
  %496 = vmatpush1.msra.mxu0 0.0
  %497 = vmatprep.subr.mxu0 0.0
  %498 = vmatpush1.msra.mxu0 0.0
  %499 = vmatprep.subr.mxu0 0.0
  %500 = vmatpush1.msra.mxu0 0.0
  %501 = vmatprep.subr.mxu0 0.0
  %502 = vmatpush1.msra.mxu0 0.0
  %503 = vmatprep.subr.mxu0 0.0
  %504 = vmatpush1.msra.mxu0 0.0
  %505 = vmatprep.subr.mxu0 0.0
  %506 = vmatpush1.msra.mxu0 0.0
  %507 = vmatprep.subr.mxu0 0.0
  %508 = vmatpush1.msra.mxu0 %v180
  %509 = vmatprep.subr.mxu0 0.0
  %510 = vmatpush1.msra.mxu0 %v179
  %511 = vmatprep.subr.mxu0 0.0
  %512 = vmatpush1.msra.mxu0 %v178
  %513 = vmatprep.subr.mxu0 0.0
  %514 = vmatpush1.msra.mxu0 %v177
  %515 = vmatprep.subr.mxu0 0.0
  %516 = vmatpush1.msra.mxu0 %v176
  %517 = vmatprep.subr.mxu0 0.0
  %518 = vmatpush1.msra.mxu0 %v175
  %519 = vmatprep.subr.mxu0 0.0
  %520 = vmatpush1.msra.mxu0 %v174
  %521 = vmatprep.subr.mxu0 0.0
  %522 = vmatpush1.msra.mxu0 %v173
  %523 = vmatprep.subr.mxu0 0.0
  %524 = vmatpush2.msra.mxu0 0.0
  %525 = vmatprep.subr.mxu0 0.0
  %526 = vmatpush2.msra.mxu0 0.0
  %527 = vmatprep.subr.mxu0 0.0
  %528 = vmatpush2.msra.mxu0 0.0
  %529 = vmatprep.subr.mxu0 0.0
  %530 = vmatpush2.msra.mxu0 0.0
  %531 = vmatprep.subr.mxu0 0.0
  %532 = vmatpush2.msra.mxu0 0.0
  %533 = vmatprep.subr.mxu0 0.0
  %534 = vmatpush2.msra.mxu0 0.0
  %535 = vmatprep.subr.mxu0 0.0
  %536 = vmatpush2.msra.mxu0 0.0
  %537 = vmatprep.subr.mxu0 0.0
  %538 = vmatpush2.msra.mxu0 0.0
  %539 = vmatprep.subr.mxu0 0.0
  %540 = vmatpush2.msra.mxu0 0.0
  %541 = vmatprep.subr.mxu0 0.0
  %542 = vmatpush2.msra.mxu0 0.0
  %543 = vmatprep.subr.mxu0 0.0
  %544 = vmatpush2.msra.mxu0 0.0
  %545 = vmatprep.subr.mxu0 0.0
  %546 = vmatpush2.msra.mxu0 0.0
  %547 = vmatprep.subr.mxu0 0.0
  %548 = vmatpush2.msra.mxu0 0.0
  %549 = vmatprep.subr.mxu0 0.0
  %550 = vmatpush2.msra.mxu0 0.0
  %551 = vmatprep.subr.mxu0 0.0
  %552 = vmatpush2.msra.mxu0 0.0
  %553 = vmatprep.subr.mxu0 0.0
  %554 = vmatpush2.msra.mxu0 0.0
  %555 = vmatprep.mubr.f32.mxu0 0.0
  %556 = vmatmul.mubr.f32.gmra.mxu0 %v489
  %v557 = vpop.f32.mrf.mxu0
  %v558 = vadd.f32 0.0, %v557
  %v559 = vpop.f32.mrf.mxu0
  %560 = vdwg.mxu0
  %v561 = vadd.f32 %v160, %v558
  %v562 = vtanh.pop %v561
  %563 = vst.msk [vmem:[#allocation2 + $0x28] sm:$0xff] %vm182, %v562
  %v565 = vsel %vm182, %v562, 0
  %567 = vmatprep.subr.mxu0 0.0
  %568 = vmatpush1.msra.mxu0 0.0
  %569 = vmatprep.subr.mxu0 0.0
  %570 = vmatpush1.msra.mxu0 0.0
  %571 = vmatprep.subr.mxu0 0.0
  %572 = vmatpush1.msra.mxu0 0.0
  %573 = vmatprep.subr.mxu0 0.0
  %574 = vmatpush1.msra.mxu0 0.0
  %575 = vmatprep.subr.mxu0 0.0
  %576 = vmatpush1.msra.mxu0 0.0
  %577 = vmatprep.subr.mxu0 0.0
  %578 = vmatpush1.msra.mxu0 0.0
  %579 = vmatprep.subr.mxu0 0.0
  %580 = vmatpush1.msra.mxu0 0.0
  %581 = vmatprep.subr.mxu0 0.0
  %582 = vmatpush1.msra.mxu0 0.0
  %583 = vmatprep.subr.mxu0 0.0
  %584 = vmatpush1.msra.mxu0 %v180
  %585 = vmatprep.subr.mxu0 0.0
  %586 = vmatpush1.msra.mxu0 %v179
  %587 = vmatprep.subr.mxu0 0.0
  %588 = vmatpush1.msra.mxu0 %v178
  %589 = vmatprep.subr.mxu0 0.0
  %590 = vmatpush1.msra.mxu0 %v177
  %591 = vmatprep.subr.mxu0 0.0
  %592 = vmatpush1.msra.mxu0 %v176
  %593 = vmatprep.subr.mxu0 0.0
  %594 = vmatpush1.msra.mxu0 %v175
  %595 = vmatprep.subr.mxu0 0.0
  %596 = vmatpush1.msra.mxu0 %v174
  %597 = vmatprep.subr.mxu0 0.0
  %598 = vmatpush1.msra.mxu0 %v173
  %599 = vmatprep.subr.mxu0 0.0
  %600 = vmatpush2.msra.mxu0 0.0
  %601 = vmatprep.subr.mxu0 0.0
  %602 = vmatpush2.msra.mxu0 0.0
  %603 = vmatprep.subr.mxu0 0.0
  %604 = vmatpush2.msra.mxu0 0.0
  %605 = vmatprep.subr.mxu0 0.0
  %606 = vmatpush2.msra.mxu0 0.0
  %607 = vmatprep.subr.mxu0 0.0
  %608 = vmatpush2.msra.mxu0 0.0
  %609 = vmatprep.subr.mxu0 0.0
  %610 = vmatpush2.msra.mxu0 0.0
  %611 = vmatprep.subr.mxu0 0.0
  %612 = vmatpush2.msra.mxu0 0.0
  %613 = vmatprep.subr.mxu0 0.0
  %614 = vmatpush2.msra.mxu0 0.0
  %615 = vmatprep.subr.mxu0 0.0
  %616 = vmatpush2.msra.mxu0 0.0
  %617 = vmatprep.subr.mxu0 0.0
  %618 = vmatpush2.msra.mxu0 0.0
  %619 = vmatprep.subr.mxu0 0.0
  %620 = vmatpush2.msra.mxu0 0.0
  %621 = vmatprep.subr.mxu0 0.0
  %622 = vmatpush2.msra.mxu0 0.0
  %623 = vmatprep.subr.mxu0 0.0
  %624 = vmatpush2.msra.mxu0 0.0
  %625 = vmatprep.subr.mxu0 0.0
  %626 = vmatpush2.msra.mxu0 0.0
  %627 = vmatprep.subr.mxu0 0.0
  %628 = vmatpush2.msra.mxu0 0.0
  %629 = vmatprep.subr.mxu0 0.0
  %630 = vmatpush2.msra.mxu0 0.0
  %631 = vmatprep.mubr.f32.mxu0 0.0
  %632 = vmatmul.mubr.f32.gmra.mxu0 %v565
  %v633 = vpop.f32.mrf.mxu0
  %v634 = vadd.f32 0.0, %v633
  %v635 = vpop.f32.mrf.mxu0
  %636 = vdwg.mxu0
  %v637 = vadd.f32 %v165, %v634
  %v638 = vtanh.pop %v637
  %639 = vst.msk [vmem:[#allocation2 + $0x30] sm:$0xff] %vm182, %v638
  %v641 = vsel %vm182, %v638, 0
  %643 = vmatprep.subr.mxu0 0.0
  %644 = vmatpush1.msra.mxu0 0.0
  %645 = vmatprep.subr.mxu0 0.0
  %646 = vmatpush1.msra.mxu0 0.0
  %647 = vmatprep.subr.mxu0 0.0
  %648 = vmatpush1.msra.mxu0 0.0
  %649 = vmatprep.subr.mxu0 0.0
  %650 = vmatpush1.msra.mxu0 0.0
  %651 = vmatprep.subr.mxu0 0.0
  %652 = vmatpush1.msra.mxu0 0.0
  %653 = vmatprep.subr.mxu0 0.0
  %654 = vmatpush1.msra.mxu0 0.0
  %655 = vmatprep.subr.mxu0 0.0
  %656 = vmatpush1.msra.mxu0 0.0
  %657 = vmatprep.subr.mxu0 0.0
  %658 = vmatpush1.msra.mxu0 0.0
  %659 = vmatprep.subr.mxu0 0.0
  %660 = vmatpush1.msra.mxu0 %v180
  %661 = vmatprep.subr.mxu0 0.0
  %662 = vmatpush1.msra.mxu0 %v179
  %663 = vmatprep.subr.mxu0 0.0
  %664 = vmatpush1.msra.mxu0 %v178
  %665 = vmatprep.subr.mxu0 0.0
  %666 = vmatpush1.msra.mxu0 %v177
  %667 = vmatprep.subr.mxu0 0.0
  %668 = vmatpush1.msra.mxu0 %v176
  %669 = vmatprep.subr.mxu0 0.0
  %670 = vmatpush1.msra.mxu0 %v175
  %671 = vmatprep.subr.mxu0 0.0
  %672 = vmatpush1.msra.mxu0 %v174
  %673 = vmatprep.subr.mxu0 0.0
  %674 = vmatpush1.msra.mxu0 %v173
  %675 = vmatprep.subr.mxu0 0.0
  %676 = vmatpush2.msra.mxu0 0.0
  %677 = vmatprep.subr.mxu0 0.0
  %678 = vmatpush2.msra.mxu0 0.0
  %679 = vmatprep.subr.mxu0 0.0
  %680 = vmatpush2.msra.mxu0 0.0
  %681 = vmatprep.subr.mxu0 0.0
  %682 = vmatpush2.msra.mxu0 0.0
  %683 = vmatprep.subr.mxu0 0.0
  %684 = vmatpush2.msra.mxu0 0.0
  %685 = vmatprep.subr.mxu0 0.0
  %686 = vmatpush2.msra.mxu0 0.0
  %687 = vmatprep.subr.mxu0 0.0
  %688 = vmatpush2.msra.mxu0 0.0
  %689 = vmatprep.subr.mxu0 0.0
  %690 = vmatpush2.msra.mxu0 0.0
  %691 = vmatprep.subr.mxu0 0.0
  %692 = vmatpush2.msra.mxu0 0.0
  %693 = vmatprep.subr.mxu0 0.0
  %694 = vmatpush2.msra.mxu0 0.0
  %695 = vmatprep.subr.mxu0 0.0
  %696 = vmatpush2.msra.mxu0 0.0
  %697 = vmatprep.subr.mxu0 0.0
  %698 = vmatpush2.msra.mxu0 0.0
  %699 = vmatprep.subr.mxu0 0.0
  %700 = vmatpush2.msra.mxu0 0.0
  %701 = vmatprep.subr.mxu0 0.0
  %702 = vmatpush2.msra.mxu0 0.0
  %703 = vmatprep.subr.mxu0 0.0
  %704 = vmatpush2.msra.mxu0 0.0
  %705 = vmatprep.subr.mxu0 0.0
  %706 = vmatpush2.msra.mxu0 0.0
  %707 = vmatprep.mubr.f32.mxu0 0.0
  %708 = vmatmul.mubr.f32.gmra.mxu0 %v641
  %v709 = vpop.f32.mrf.mxu0
  %v710 = vadd.f32 0.0, %v709
  %v711 = vpop.f32.mrf.mxu0
  %712 = vdwg.mxu0
  %v713 = vadd.f32 %v170, %v710
  %v714 = vtanh.pop %v713
  %715 = vst.msk [vmem:[#allocation2 + $0x38] sm:$0xff] %vm182, %v714
  %v716 = vld [vmem:[#allocation2] sm:$0xff]
  %v717 = vld [vmem:[#allocation2 + $0x8] sm:$0xff]
  %v718 = vld [vmem:[#allocation2 + $0x10] sm:$0xff]
  %v719 = vld [vmem:[#allocation2 + $0x18] sm:$0xff]
  %v720 = vld [vmem:[#allocation2 + $0x20] sm:$0xff]
  %v721 = vld [vmem:[#allocation2 + $0x28] sm:$0xff]
  %v722 = vld [vmem:[#allocation2 + $0x30] sm:$0xff]
  %v723 = vld [vmem:[#allocation2 + $0x38] sm:$0xff]
  %v724 = vld [vmem:[%s4] sm:$0xff]
  %v725 = vld [vmem:[%s4 + $0x8] sm:$0xff]
  %v726 = vld [vmem:[%s4 + $0x10] sm:$0xff]
  %v727 = vld [vmem:[%s4 + $0x18] sm:$0xff]
  %v728 = vld [vmem:[%s4 + $0x20] sm:$0xff]
  %v729 = vld [vmem:[%s4 + $0x28] sm:$0xff]
  %v730 = vld [vmem:[%s4 + $0x30] sm:$0xff]
  %v731 = vld [vmem:[%s4 + $0x38] sm:$0xff]
  %v732 = vld [vmem:[%s5] sm:$0x1]
  %v734 = vlaneseq
  %v735 = vshrl.u32 %v734, 7
  %v736 = vsub.s32 0, %v735
  %v737 = vrot.slane %v732, %v736
  %v740 = vsel %vm182, %v716, 0
  %v743 = vsel %vm182, %v717, 0
  %v746 = vsel %vm182, %v718, 0
  %v749 = vsel %vm182, %v719, 0
  %v752 = vsel %vm182, %v720, 0
  %v755 = vsel %vm182, %v721, 0
  %v758 = vsel %vm182, %v722, 0
  %v761 = vsel %vm182, %v723, 0
  %763 = vmatprep.subr.mxu0 0.0
  %764 = vmatpush1.msra.mxu0 0.0
  %765 = vmatprep.subr.mxu0 0.0
  %766 = vmatpush1.msra.mxu0 0.0
  %767 = vmatprep.subr.mxu0 0.0
  %768 = vmatpush1.msra.mxu0 0.0
  %769 = vmatprep.subr.mxu0 0.0
  %770 = vmatpush1.msra.mxu0 0.0
  %771 = vmatprep.subr.mxu0 0.0
  %772 = vmatpush1.msra.mxu0 0.0
  %773 = vmatprep.subr.mxu0 0.0
  %774 = vmatpush1.msra.mxu0 0.0
  %775 = vmatprep.subr.mxu0 0.0
  %776 = vmatpush1.msra.mxu0 0.0
  %777 = vmatprep.subr.mxu0 0.0
  %778 = vmatpush1.msra.mxu0 0.0
  %779 = vmatprep.subr.mxu0 0.0
  %780 = vmatpush1.msra.mxu0 %v731
  %781 = vmatprep.subr.mxu0 0.0
  %782 = vmatpush1.msra.mxu0 %v730
  %783 = vmatprep.subr.mxu0 0.0
  %784 = vmatpush1.msra.mxu0 %v729
  %785 = vmatprep.subr.mxu0 0.0
  %786 = vmatpush1.msra.mxu0 %v728
  %787 = vmatprep.subr.mxu0 0.0
  %788 = vmatpush1.msra.mxu0 %v727
  %789 = vmatprep.subr.mxu0 0.0
  %790 = vmatpush1.msra.mxu0 %v726
  %791 = vmatprep.subr.mxu0 0.0
  %792 = vmatpush1.msra.mxu0 %v725
  %793 = vmatprep.subr.mxu0 0.0
  %794 = vmatpush1.msra.mxu0 %v724
  %795 = vmatprep.subr.mxu0 0.0
  %796 = vmatpush2.msra.mxu0 0.0
  %797 = vmatprep.subr.mxu0 0.0
  %798 = vmatpush2.msra.mxu0 0.0
  %799 = vmatprep.subr.mxu0 0.0
  %800 = vmatpush2.msra.mxu0 0.0
  %801 = vmatprep.subr.mxu0 0.0
  %802 = vmatpush2.msra.mxu0 0.0
  %803 = vmatprep.subr.mxu0 0.0
  %804 = vmatpush2.msra.mxu0 0.0
  %805 = vmatprep.subr.mxu0 0.0
  %806 = vmatpush2.msra.mxu0 0.0
  %807 = vmatprep.subr.mxu0 0.0
  %808 = vmatpush2.msra.mxu0 0.0
  %809 = vmatprep.subr.mxu0 0.0
  %810 = vmatpush2.msra.mxu0 0.0
  %811 = vmatprep.subr.mxu0 0.0
  %812 = vmatpush2.msra.mxu0 0.0
  %813 = vmatprep.subr.mxu0 0.0
  %814 = vmatpush2.msra.mxu0 0.0
  %815 = vmatprep.subr.mxu0 0.0
  %816 = vmatpush2.msra.mxu0 0.0
  %817 = vmatprep.subr.mxu0 0.0
  %818 = vmatpush2.msra.mxu0 0.0
  %819 = vmatprep.subr.mxu0 0.0
  %820 = vmatpush2.msra.mxu0 0.0
  %821 = vmatprep.subr.mxu0 0.0
  %822 = vmatpush2.msra.mxu0 0.0
  %823 = vmatprep.subr.mxu0 0.0
  %824 = vmatpush2.msra.mxu0 0.0
  %825 = vmatprep.subr.mxu0 0.0
  %826 = vmatpush2.msra.mxu0 0.0
  %827 = vmatprep.mubr.f32.mxu0 0.0
  %828 = vmatmul.mubr.f32.gmra.mxu0 %v740
  %v829 = vpop.f32.mrf.mxu0
  %v830 = vadd.f32 %v737, %v829
  %v831 = vpop.f32.mrf.mxu0
  %832 = vmatprep.mubr.f32.mxu0 0.0
  %833 = vmatmul.mubr.f32.gmra.mxu0 %v743
  %v834 = vpop.f32.mrf.mxu0
  %v835 = vadd.f32 %v737, %v834
  %v836 = vpop.f32.mrf.mxu0
  %837 = vmatprep.mubr.f32.mxu0 0.0
  %838 = vmatmul.mubr.f32.gmra.mxu0 %v746
  %v839 = vpop.f32.mrf.mxu0
  %v840 = vadd.f32 %v737, %v839
  %v841 = vpop.f32.mrf.mxu0
  %842 = vmatprep.mubr.f32.mxu0 0.0
  %843 = vmatmul.mubr.f32.gmra.mxu0 %v749
  %v844 = vpop.f32.mrf.mxu0
  %v845 = vadd.f32 %v737, %v844
  %v846 = vpop.f32.mrf.mxu0
  %847 = vmatprep.mubr.f32.mxu0 0.0
  %848 = vmatmul.mubr.f32.gmra.mxu0 %v752
  %v849 = vpop.f32.mrf.mxu0
  %v850 = vadd.f32 %v737, %v849
  %v851 = vpop.f32.mrf.mxu0
  %852 = vmatprep.mubr.f32.mxu0 0.0
  %853 = vmatmul.mubr.f32.gmra.mxu0 %v755
  %v854 = vpop.f32.mrf.mxu0
  %v855 = vadd.f32 %v737, %v854
  %v856 = vpop.f32.mrf.mxu0
  %857 = vmatprep.mubr.f32.mxu0 0.0
  %858 = vmatmul.mubr.f32.gmra.mxu0 %v758
  %v859 = vpop.f32.mrf.mxu0
  %v860 = vadd.f32 %v737, %v859
  %v861 = vpop.f32.mrf.mxu0
  %862 = vmatprep.mubr.f32.mxu0 0.0
  %863 = vmatmul.mubr.f32.gmra.mxu0 %v761
  %v864 = vpop.f32.mrf.mxu0
  %v865 = vadd.f32 %v737, %v864
  %v866 = vpop.f32.mrf.mxu0
  %867 = vdwg.mxu0
  %868 = vst.msk [vmem:[%s6] sm:$0xff] %vm39, %v830
  %869 = vst.msk [vmem:[%s6 + $0x8] sm:$0xff] %vm39, %v835
  %870 = vst.msk [vmem:[%s6 + $0x10] sm:$0xff] %vm39, %v840
  %871 = vst.msk [vmem:[%s6 + $0x18] sm:$0xff] %vm39, %v845
  %872 = vst.msk [vmem:[%s6 + $0x20] sm:$0xff] %vm39, %v850
  %873 = vst.msk [vmem:[%s6 + $0x28] sm:$0xff] %vm39, %v855
  %874 = vst.msk [vmem:[%s6 + $0x30] sm:$0xff] %vm39, %v860
  %875 = vst.msk [vmem:[%s6 + $0x38] sm:$0xff] %vm39, %v865
  // Predicated region
  $region26: #{rnn_forward.1} parent=0 // pred_check
    _
  $region27: #{rnn_forward.1} parent=0 // pred_check_branch
    %877 = sbr.rel (0) target = $region29
  $region28: #{rnn_forward.1} parent=0 // pred_region
    _
  $region29: #{rnn_forward.1} parent=0 // pred_fallthru
    _
  // Predicated region
  $region30: #{rnn_forward.1} parent=0 // pred_check
    _
  $region31: #{rnn_forward.1} parent=0 // pred_check_branch
    %879 = sbr.rel (0) target = $region33
  $region32: #{rnn_forward.1} parent=0 // pred_region
    _
  $region33: #{rnn_forward.1} parent=0 // pred_fallthru
    _

</llo_original>
